<compile_context>
chip_gen: v7x
topology: tpu7x:2x2x1
jax: 0.10.0
libtpu: 0.0.40
codegen_flags: <defaults>
</compile_context>

<pallas_src>
import functools

import jax
import jax.numpy as jnp
import numpy as np
from jax.experimental import pallas as pl
from jax.experimental.pallas import tpu as pltpu


# ----------------------------------------------------------------------------
# Pallas kernel: one batch element per grid step, channels-first (C, T*V).
# ----------------------------------------------------------------------------
def _tbl_kernel(x_ref, w1_ref, wt_ref, w3_ref, bias_ref, o_ref,
                *, T, V, K, Ci, off1, off2, off3):
    C = x_ref.shape[1]
    TV = T * V
    pad = (K - 1) // 2

    x = x_ref[0]                                   # (C, TV) f32, lane-dense
    xb = x.astype(jnp.bfloat16)                    # matmul operand only

    biases = bias_ref[...]                         # (Btot, 1) f32, packed
    b1 = biases[off1:off1 + Ci]                    # (Ci, 1)
    b2 = biases[off2:off2 + Ci]                    # (Ci, 1)
    b3 = biases[off3:off3 + C]                     # (C, 1)

    # ---- reduct_conv: 1x1 conv (BN scale folded into weight) + bias + ReLU --
    y1 = jnp.dot(w1_ref[...], xb, preferred_element_type=jnp.float32)
    y1 = jnp.maximum(y1 + b1, 0.0)                 # (Ci, TV) f32

    # ---- temporal (K x 1) conv: im2col via lane roll + mask, ONE matmul -----
    # Column j = t*V + v; a temporal offset of s rows is a lane shift of s*V.
    col = jax.lax.broadcasted_iota(jnp.int32, (Ci, TV), 1)
    taps = []
    for k in range(K):                             # static unroll, K is small
        s = k - pad                                # temporal offset of tap k
        if s == 0:
            taps.append(y1)
        else:
            rolled = pltpu.roll(y1, shift=(-s * V) % TV, axis=1)
            valid = (col < (T - s) * V) if s > 0 else (col >= (-s) * V)
            taps.append(jnp.where(valid, rolled, 0.0))
    stacked = jnp.concatenate(taps, axis=0).astype(jnp.bfloat16)   # (K*Ci, TV)
    y2 = jnp.dot(wt_ref[...], stacked, preferred_element_type=jnp.float32)
    y2 = jnp.maximum(y2 + b2, 0.0)                 # (Ci, TV) f32

    # ---- expand_conv: 1x1 conv + bias + identity residual + ReLU ------------
    y3 = jnp.dot(w3_ref[...], y2.astype(jnp.bfloat16),
                 preferred_element_type=jnp.float32)
    o_ref[0] = jnp.maximum(y3 + b3 + x, 0.0)       # (C, TV) f32, lane-dense


def temporal_bottleneck_forward(x_nchw, params):
    """x_nchw: (N, C, T, V) float32 (PyTorch layout).  Returns same shape."""
    N, C, T, V = x_nchw.shape
    w1, wt, w3, bias, (off1, off2, off3) = params
    Ci = w1.shape[0]
    K = wt.shape[1] // Ci
    TV = T * V

    x_flat = x_nchw.reshape(N, C, TV)              # metadata-only reshape

    flops = 2 * N * TV * (C * Ci + K * Ci * Ci + Ci * C)
    bytes_accessed = (4 * 2 * N * C * TV
                      + 2 * (w1.size + wt.size + w3.size) + 4 * bias.size)

    kernel = functools.partial(_tbl_kernel, T=T, V=V, K=K, Ci=Ci,
                               off1=off1, off2=off2, off3=off3)

    out_flat = pl.pallas_call(
        kernel,
        out_shape=jax.ShapeDtypeStruct((N, C, TV), jnp.float32),
        grid_spec=pltpu.PrefetchScalarGridSpec(
            num_scalar_prefetch=0,
            grid=(N,),
            in_specs=[
                pl.BlockSpec((1, C, TV), lambda n: (n, 0, 0)),   # x, lane-dense
                pl.BlockSpec(w1.shape, lambda n: (0, 0)),        # (Ci, C)  bf16
                pl.BlockSpec(wt.shape, lambda n: (0, 0)),        # (Ci, K*Ci) bf16
                pl.BlockSpec(w3.shape, lambda n: (0, 0)),        # (C, Ci)  bf16
                pl.BlockSpec(bias.shape, lambda n: (0, 0)),      # packed biases
            ],
            out_specs=pl.BlockSpec((1, C, TV), lambda n: (n, 0, 0)),
        ),
        compiler_params=pltpu.CompilerParams(
            dimension_semantics=("parallel",)),
        cost_estimate=pl.CostEstimate(flops=flops, transcendentals=0,
                                      bytes_accessed=bytes_accessed),
    )(x_flat, w1, wt, w3, bias)

    return out_flat.reshape(N, C, T, V)


# ----------------------------------------------------------------------------
# Deterministic parameter construction (PyTorch layout) + BN folding.
# ----------------------------------------------------------------------------
def make_params(key, channel, inner, K, eps=1e-5):
    keys = jax.random.split(key, 18)
    idx = iter(range(18))

    def nrm(shape, scale=0.1):
        return scale * jax.random.normal(keys[next(idx)], shape, jnp.float32)

    # raw conv weights / biases (PyTorch OIHW convention)
    w1_pt = nrm((inner, channel, 1, 1))
    b1_pt = nrm((inner,))
    wt_pt = nrm((inner, inner, K, 1))
    b2_pt = nrm((inner,))
    w3_pt = nrm((channel, inner, 1, 1))
    b3_pt = nrm((channel,))

    def bn_params(c):
        gamma = 1.0 + nrm((c,))
        beta = nrm((c,))
        mean = nrm((c,))
        var = 1.0 + 0.1 * jax.random.uniform(keys[next(idx)], (c,), jnp.float32)
        return gamma, beta, mean, var

    bn1 = bn_params(inner)
    bn2 = bn_params(inner)
    bn3 = bn_params(channel)

    def fold(conv_b, bn):
        gamma, beta, mean, var = bn
        scale = gamma / jnp.sqrt(var + eps)
        shift = beta + (conv_b - mean) * scale
        return scale, shift

    s1, bias1 = fold(b1_pt, bn1)
    s2, bias2 = fold(b2_pt, bn2)
    s3, bias3 = fold(b3_pt, bn3)

    # Channels-first kernel weights with the BN scale folded per output row.
    w1_k = (s1[:, None] * w1_pt[:, :, 0, 0]).astype(jnp.bfloat16)   # (Ci, C)
    wt_k = (s2[:, None]
            * jnp.transpose(wt_pt[:, :, :, 0], (0, 2, 1)).reshape(inner, K * inner)
            ).astype(jnp.bfloat16)                                   # (Ci, K*Ci)
    w3_k = (s3[:, None] * w3_pt[:, :, 0, 0]).astype(jnp.bfloat16)   # (C, Ci)

    # Pack the three bias vectors into one column operand (8-row aligned).
    seg = lambda n: -(-n // 8) * 8
    off1 = 0
    off2 = off1 + seg(inner)
    off3 = off2 + seg(inner)
    total = off3 + seg(channel)
    bias = jnp.zeros((total, 1), jnp.float32)
    bias = bias.at[off1:off1 + inner, 0].set(bias1)
    bias = bias.at[off2:off2 + inner, 0].set(bias2)
    bias = bias.at[off3:off3 + channel, 0].set(bias3)

    kernel_params = (w1_k, wt_k, w3_k, bias, (off1, off2, off3))
    torch_params = (w1_pt, b1_pt, bn1, wt_pt, b2_pt, bn2, w3_pt, b3_pt, bn3)
    return kernel_params, torch_params


# ----------------------------------------------------------------------------
# Pure-JAX reference (NCHW, lax.conv, f32) for verification.
# ----------------------------------------------------------------------------
def reference(x_nchw, torch_params, K, eps=1e-5):
    w1_pt, b1_pt, bn1, wt_pt, b2_pt, bn2, w3_pt, b3_pt, bn3 = torch_params

    def conv(x, w, b, pad_h=0):
        y = jax.lax.conv_general_dilated(
            x, w, window_strides=(1, 1),
            padding=((pad_h, pad_h), (0, 0)),
            dimension_numbers=('NCHW', 'OIHW', 'NCHW'))
        return y + b[None, :, None, None]

    def bn(x, p):
        gamma, beta, mean, var = p
        return ((x - mean[None, :, None, None])
                / jnp.sqrt(var[None, :, None, None] + eps)
                * gamma[None, :, None, None] + beta[None, :, None, None])

    res = x_nchw
    y = jax.nn.relu(bn(conv(x_nchw, w1_pt, b1_pt), bn1))
    y = jax.nn.relu(bn(conv(y, wt_pt, b2_pt, pad_h=(K - 1) // 2), bn2))
    y = jax.nn.relu(bn(conv(y, w3_pt, b3_pt), bn3) + res)
    return y


if __name__ == "__main__":
    # Module hyper-parameters (stride=1, residual=True -> identity residual).
    N, C, T, V = 2, 32, 16, 16
    temporal_window_size = 3
    reduct_ratio = 4
    inner = C // reduct_ratio

    key = jax.random.PRNGKey(0)
    kx, kp = jax.random.split(key)
    x_nchw = jax.random.normal(kx, (N, C, T, V), jnp.float32)

    kernel_params, torch_params = make_params(kp, C, inner, temporal_window_size)

    out = temporal_bottleneck_forward(x_nchw, kernel_params)
    out = jax.block_until_ready(out)

    ref = jax.block_until_ready(reference(x_nchw, torch_params,
                                          temporal_window_size))
    # bf16 matmul operands with f32 accumulation -> ~1e-3 typical error.
    assert np.allclose(np.asarray(out), np.asarray(ref),
                       atol=2e-2, rtol=2e-2), "mismatch vs reference"
    print("KERNEL_OK")
</pallas_src>

<mosaic_0001>
module attributes {stable_mosaic.version = 11 : i64} {
  func.func @_tbl_kernel(%arg0: i32, %arg1: memref<1x32x256xf32, #tpu.memory_space<vmem>>, %arg2: memref<8x32xbf16, #tpu.memory_space<vmem>>, %arg3: memref<8x24xbf16, #tpu.memory_space<vmem>>, %arg4: memref<32x8xbf16, #tpu.memory_space<vmem>>, %arg5: memref<48x1xf32, #tpu.memory_space<vmem>>, %arg6: memref<1x32x256xf32, #tpu.memory_space<vmem>>) attributes {dimension_semantics = [#tpu.dimension_semantics<parallel>], iteration_bounds = array<i64: 2>, scalar_prefetch = 0 : i64, scratch_operands = 0 : i64, tpu.core_type = #tpu.core_type<tc>, window_params = [{transform_indices = @transform_0, window_bounds = array<i64: 1, 32, 256>}, {pipeline_mode = #tpu.pipeline_mode<synchronous>, transform_indices = @transform_1, window_bounds = array<i64: 8, 32>}, {pipeline_mode = #tpu.pipeline_mode<synchronous>, transform_indices = @transform_2, window_bounds = array<i64: 8, 24>}, {pipeline_mode = #tpu.pipeline_mode<synchronous>, transform_indices = @transform_3, window_bounds = array<i64: 32, 8>}, {pipeline_mode = #tpu.pipeline_mode<synchronous>, transform_indices = @transform_4, window_bounds = array<i64: 48, 1>}, {transform_indices = @transform_5, window_bounds = array<i64: 1, 32, 256>}]} {
    %c0 = arith.constant 0 : index
    %c0_0 = arith.constant 0 : index
    %c0_1 = arith.constant 0 : index
    %0 = vector.load %arg1[%c0, %c0_0, %c0_1] : memref<1x32x256xf32, #tpu.memory_space<vmem>>, vector<1x32x256xf32>
    %1 = vector.shape_cast %0 : vector<1x32x256xf32> to vector<32x256xf32>
    %2 = arith.truncf %1 : vector<32x256xf32> to vector<32x256xbf16>
    %c0_2 = arith.constant 0 : index
    %c0_3 = arith.constant 0 : index
    %3 = vector.load %arg5[%c0_2, %c0_3] : memref<48x1xf32, #tpu.memory_space<vmem>>, vector<48x1xf32>
    %4 = vector.extract_strided_slice %3 {offsets = [0, 0], sizes = [8, 1], strides = [1, 1]} : vector<48x1xf32> to vector<8x1xf32>
    %5 = vector.extract_strided_slice %3 {offsets = [8, 0], sizes = [8, 1], strides = [1, 1]} : vector<48x1xf32> to vector<8x1xf32>
    %6 = vector.extract_strided_slice %3 {offsets = [16, 0], sizes = [32, 1], strides = [1, 1]} : vector<48x1xf32> to vector<32x1xf32>
    %c0_4 = arith.constant 0 : index
    %c0_5 = arith.constant 0 : index
    %7 = vector.load %arg2[%c0_4, %c0_5] : memref<8x32xbf16, #tpu.memory_space<vmem>>, vector<8x32xbf16>
    %cst = arith.constant dense<0.000000e+00> : vector<8x256xf32>
    %8 = tpu.matmul %7, %2, %cst {dimension_numbers = #tpu.dot_dimension_numbers<[1], [0], [0], [1], [0, 0, 1, 1], [], []>} : vector<8x32xbf16>, vector<32x256xbf16>, vector<8x256xf32> -> vector<8x256xf32>
    %9 = vector.broadcast %4 : vector<8x1xf32> to vector<8x256xf32>
    %10 = arith.addf %8, %9 : vector<8x256xf32>
    %cst_6 = arith.constant 0.000000e+00 : f32
    %11 = vector.broadcast %cst_6 : f32 to vector<8x256xf32>
    %12 = arith.maximumf %10, %11 : vector<8x256xf32>
    %13 = tpu.iota {dimensions = array<i32: 1>} : vector<8x256xi32>
    %c16_i32 = arith.constant 16 : i32
    %14 = tpu.dynamic_rotate %12 by %c16_i32 dim 1 : vector<8x256xf32>, i32 -> vector<8x256xf32>
    %c16_i32_7 = arith.constant 16 : i32
    %15 = vector.broadcast %c16_i32_7 : i32 to vector<8x256xi32>
    %16 = arith.cmpi sge, %13, %15 : vector<8x256xi32>
    %cst_8 = arith.constant 0.000000e+00 : f32
    %17 = vector.broadcast %cst_8 : f32 to vector<8x256xf32>
    %18 = arith.select %16, %14, %17 : vector<8x256xi1>, vector<8x256xf32>
    %c240_i32 = arith.constant 240 : i32
    %19 = tpu.dynamic_rotate %12 by %c240_i32 dim 1 : vector<8x256xf32>, i32 -> vector<8x256xf32>
    %c240_i32_9 = arith.constant 240 : i32
    %20 = vector.broadcast %c240_i32_9 : i32 to vector<8x256xi32>
    %21 = arith.cmpi slt, %13, %20 : vector<8x256xi32>
    %cst_10 = arith.constant 0.000000e+00 : f32
    %22 = vector.broadcast %cst_10 : f32 to vector<8x256xf32>
    %23 = arith.select %21, %19, %22 : vector<8x256xi1>, vector<8x256xf32>
    %24 = tpu.concatenate %18, %12, %23 in 0 : vector<8x256xf32>, vector<8x256xf32>, vector<8x256xf32> -> vector<24x256xf32>
    %25 = arith.truncf %24 : vector<24x256xf32> to vector<24x256xbf16>
    %c0_11 = arith.constant 0 : index
    %c0_12 = arith.constant 0 : index
    %26 = vector.load %arg3[%c0_11, %c0_12] : memref<8x24xbf16, #tpu.memory_space<vmem>>, vector<8x24xbf16>
    %cst_13 = arith.constant dense<0.000000e+00> : vector<8x256xf32>
    %27 = tpu.matmul %26, %25, %cst_13 {dimension_numbers = #tpu.dot_dimension_numbers<[1], [0], [0], [1], [0, 0, 1, 1], [], []>} : vector<8x24xbf16>, vector<24x256xbf16>, vector<8x256xf32> -> vector<8x256xf32>
    %28 = vector.broadcast %5 : vector<8x1xf32> to vector<8x256xf32>
    %29 = arith.addf %27, %28 : vector<8x256xf32>
    %cst_14 = arith.constant 0.000000e+00 : f32
    %30 = vector.broadcast %cst_14 : f32 to vector<8x256xf32>
    %31 = arith.maximumf %29, %30 : vector<8x256xf32>
    %c0_15 = arith.constant 0 : index
    %c0_16 = arith.constant 0 : index
    %32 = vector.load %arg4[%c0_15, %c0_16] : memref<32x8xbf16, #tpu.memory_space<vmem>>, vector<32x8xbf16>
    %33 = arith.truncf %31 : vector<8x256xf32> to vector<8x256xbf16>
    %cst_17 = arith.constant dense<0.000000e+00> : vector<32x256xf32>
    %34 = tpu.matmul %32, %33, %cst_17 {dimension_numbers = #tpu.dot_dimension_numbers<[1], [0], [0], [1], [0, 0, 1, 1], [], []>} : vector<32x8xbf16>, vector<8x256xbf16>, vector<32x256xf32> -> vector<32x256xf32>
    %35 = vector.broadcast %6 : vector<32x1xf32> to vector<32x256xf32>
    %36 = arith.addf %34, %35 : vector<32x256xf32>
    %37 = arith.addf %36, %1 : vector<32x256xf32>
    %cst_18 = arith.constant 0.000000e+00 : f32
    %38 = vector.broadcast %cst_18 : f32 to vector<32x256xf32>
    %39 = arith.maximumf %37, %38 : vector<32x256xf32>
    %c0_19 = arith.constant 0 : index
    %c0_20 = arith.constant 0 : index
    %c0_21 = arith.constant 0 : index
    %40 = vector.load %arg6[%c0_19, %c0_20, %c0_21] : memref<1x32x256xf32, #tpu.memory_space<vmem>>, vector<1x32x256xf32>
    %41 = vector.shape_cast %40 : vector<1x32x256xf32> to vector<32x256xf32>
    %42 = vector.shape_cast %39 : vector<32x256xf32> to vector<1x32x256xf32>
    tpu.vector_store %arg6[%c0_19, %c0_20, %c0_21], %42 {strides = array<i32>} : memref<1x32x256xf32, #tpu.memory_space<vmem>>, vector<1x32x256xf32>,
    return
  }
  func.func @transform_0(%arg0: i32) -> (i32, i32, i32) {
    %c0_i32 = arith.constant 0 : i32
    %c0_i32_0 = arith.constant 0 : i32
    %c0_i32_1 = arith.constant 0 : i32
    return %arg0, %c0_i32, %c0_i32_0 : i32, i32, i32
  }
  func.func @transform_1(%arg0: i32) -> (i32, i32) {
    %c0_i32 = arith.constant 0 : i32
    %c0_i32_0 = arith.constant 0 : i32
    %c0_i32_1 = arith.constant 0 : i32
    return %c0_i32, %c0_i32_0 : i32, i32
  }
  func.func @transform_2(%arg0: i32) -> (i32, i32) {
    %c0_i32 = arith.constant 0 : i32
    %c0_i32_0 = arith.constant 0 : i32
    %c0_i32_1 = arith.constant 0 : i32
    return %c0_i32, %c0_i32_0 : i32, i32
  }
  func.func @transform_3(%arg0: i32) -> (i32, i32) {
    %c0_i32 = arith.constant 0 : i32
    %c0_i32_0 = arith.constant 0 : i32
    %c0_i32_1 = arith.constant 0 : i32
    return %c0_i32, %c0_i32_0 : i32, i32
  }
  func.func @transform_4(%arg0: i32) -> (i32, i32) {
    %c0_i32 = arith.constant 0 : i32
    %c0_i32_0 = arith.constant 0 : i32
    %c0_i32_1 = arith.constant 0 : i32
    return %c0_i32, %c0_i32_0 : i32, i32
  }
  func.func @transform_5(%arg0: i32) -> (i32, i32, i32) {
    %c0_i32 = arith.constant 0 : i32
    %c0_i32_0 = arith.constant 0 : i32
    %c0_i32_1 = arith.constant 0 : i32
    return %arg0, %c0_i32, %c0_i32_0 : i32, i32, i32
  }
}

</mosaic_0001>

<llo_original>
// kernel: tpu_custom_call.1
$region0: #{tpu_custom_call.1}
  #allocation0 [shape = 'u32[]', space=smem, size = 0x4, offset = 0x4, fixed_abs, tag = 'smem constant byte address 0x4 - core index']
  #allocation1 [shape = 'u32[144,128]{1,0:T(1,128)}', space=vmem, size = 0x12000, scoped, tag = 'internal scratch']
  %s0 = inlined_call_operand.hbm [shape: f32[2,32,256], index: 0, kind: input, shape index: {}]
  %s1 = inlined_call_operand.vmem [shape: bf16[8,32], index: 1, kind: input, shape index: {}]
  %s2 = inlined_call_operand.vmem [shape: bf16[8,24], index: 2, kind: input, shape index: {}]
  %s3 = inlined_call_operand.vmem [shape: bf16[32,8], index: 3, kind: input, shape index: {}]
  %s4 = inlined_call_operand.vmem [shape: f32[48,1], index: 4, kind: input, shape index: {}]
  %s5 = inlined_call_operand.hbm [shape: f32[2,32,256], index: 5, kind: output, shape index: {}]
  %s6 = sld [smem:[#allocation0]]
  $region57: #{tpu_custom_call.1} parent=0
    _
  %s8 = ssub.s32 1, %s6
  %s9 = scalar_select 0, %s8, %s6
  $region1: #{tpu_custom_call.1} parent=0
    #allocation2 [shape = 'u8[65536]{0}', space=vmem, size = 0x10000, scoped, tag = 'input window, operand 0']
    #allocation3 [shape = 's32[2]{0}', space=sflag, size = 0x8, scoped, tag = 'scoped memory for tpu_custom_call.1']
    #allocation4 [shape = 's32[2]{0}', space=sflag, size = 0x8, scoped, tag = 'scoped memory for tpu_custom_call.1']
    #allocation5 [shape = 'u8[65536]{0}', space=vmem, size = 0x10000, scoped, tag = 'output window, operand 0']
    %10 = vsyncpa [#allocation3], 0
    %s11 = scalar_lea.sflag [#allocation3], 1
    %12 = vsyncpa %s11, 0
    %13 = vsyncpa [#allocation4], 0
    %s14 = scalar_lea.sflag [#allocation4], 1
    %15 = vsyncpa %s14, 0
    loop: start=0, step=1, limit=4
    $region2: #{tpu_custom_call.1} parent=1 // loop_pre_header
      _
    $region3: #{tpu_custom_call.1} parent=1 // loop_header
      %s17 = sphi 0, %s21
      %p18 = scmp.ge.s32.totalorder %s17, 4
      %s27 = sphi 0, %s29
      %s30 = sphi 0, %s27
      %s31 = sphi 0, %s30
      %s47 = sphi 0, %s31
      %s51 = sphi 0, %s51
      %s53 = sphi 0, %s51
      %s54 = sphi 0, %s53
      %s68 = sphi 0, %s54
      %s72 = sphi 0, %s72
      %s74 = sphi 0, %s72
      %s75 = sphi 0, %s74
      %s89 = sphi 0, %s75
      %s93 = sphi 0, %s93
      %s95 = sphi 0, %s93
      %s96 = sphi 0, %s95
      %s110 = sphi 0, %s96
      %s114 = sphi 0, %s114
      %s116 = sphi 0, %s114
      %s117 = sphi 0, %s116
      %s131 = sphi 0, %s117
      %s137 = sphi 0, %s139
      %s140 = sphi 0, %s137
      %s141 = sphi 0, %s140
      %s157 = sphi 0, %s141
    $region4: #{tpu_custom_call.1} parent=1 // loop_header_branch
      %20 = sbr.rel (%p18) target = $region8
    $region5: #{tpu_custom_call.1} parent=1 // loop_body
      %s22 = ssub.s32 %s17, 1
      %s23 = ssub.s32 %s17, 2
      %s24 = sadd.s32 %s17, 1
      %s25 = ssub.s32 %s17, %s24
      %p26 = scmp.eq.s32.totalorder %s25, 0
      %s28 = sadd.s32 %s27, 1
      %s29 = scalar_select %p26, %s27, %s28
      %p32 = pneg %p26
      %p33 = scmp.eq.s32.totalorder %s17, 1
      %p34 = por %p32, %p33
      %p35 = scmp.ne.s32.totalorder %s27, %s30
      %p36 = scmp.eq.s32.totalorder %s17, 0
      %p37 = por %p35, %p36
      %p38 = scmp.ne.s32.totalorder %s27, %s30
      %p39 = scmp.eq.s32.totalorder %s22, 1
      %p40 = por %p38, %p39
      %p41 = scmp.ne.s32.totalorder %s30, %s31
      %p42 = scmp.eq.s32.totalorder %s22, 0
      %p43 = por %p41, %p42
      %p44 = scmp.ne.s32.totalorder %s30, %s31
      %p45 = scmp.eq.s32.totalorder %s23, 1
      %p46 = por %p44, %p45
      %p48 = scmp.ne.s32.totalorder %s31, %s47
      %p49 = scmp.eq.s32.totalorder %s23, 0
      %p50 = por %p48, %p49
      %s52 = sadd.s32 %s51, 1
      %p55 = scmp.eq.s32.totalorder %s17, 1
      %p56 = scmp.ne.s32.totalorder %s51, %s53
      %p57 = scmp.eq.s32.totalorder %s17, 0
      %p58 = por %p56, %p57
      %p59 = scmp.ne.s32.totalorder %s51, %s53
      %p60 = scmp.eq.s32.totalorder %s22, 1
      %p61 = por %p59, %p60
      %p62 = scmp.ne.s32.totalorder %s53, %s54
      %p63 = scmp.eq.s32.totalorder %s22, 0
      %p64 = por %p62, %p63
      %p65 = scmp.ne.s32.totalorder %s53, %s54
      %p66 = scmp.eq.s32.totalorder %s23, 1
      %p67 = por %p65, %p66
      %p69 = scmp.ne.s32.totalorder %s54, %s68
      %p70 = scmp.eq.s32.totalorder %s23, 0
      %p71 = por %p69, %p70
      %s73 = sadd.s32 %s72, 1
      %p76 = scmp.eq.s32.totalorder %s17, 1
      %p77 = scmp.ne.s32.totalorder %s72, %s74
      %p78 = scmp.eq.s32.totalorder %s17, 0
      %p79 = por %p77, %p78
      %p80 = scmp.ne.s32.totalorder %s72, %s74
      %p81 = scmp.eq.s32.totalorder %s22, 1
      %p82 = por %p80, %p81
      %p83 = scmp.ne.s32.totalorder %s74, %s75
      %p84 = scmp.eq.s32.totalorder %s22, 0
      %p85 = por %p83, %p84
      %p86 = scmp.ne.s32.totalorder %s74, %s75
      %p87 = scmp.eq.s32.totalorder %s23, 1
      %p88 = por %p86, %p87
      %p90 = scmp.ne.s32.totalorder %s75, %s89
      %p91 = scmp.eq.s32.totalorder %s23, 0
      %p92 = por %p90, %p91
      %s94 = sadd.s32 %s93, 1
      %p97 = scmp.eq.s32.totalorder %s17, 1
      %p98 = scmp.ne.s32.totalorder %s93, %s95
      %p99 = scmp.eq.s32.totalorder %s17, 0
      %p100 = por %p98, %p99
      %p101 = scmp.ne.s32.totalorder %s93, %s95
      %p102 = scmp.eq.s32.totalorder %s22, 1
      %p103 = por %p101, %p102
      %p104 = scmp.ne.s32.totalorder %s95, %s96
      %p105 = scmp.eq.s32.totalorder %s22, 0
      %p106 = por %p104, %p105
      %p107 = scmp.ne.s32.totalorder %s95, %s96
      %p108 = scmp.eq.s32.totalorder %s23, 1
      %p109 = por %p107, %p108
      %p111 = scmp.ne.s32.totalorder %s96, %s110
      %p112 = scmp.eq.s32.totalorder %s23, 0
      %p113 = por %p111, %p112
      %s115 = sadd.s32 %s114, 1
      %p118 = scmp.eq.s32.totalorder %s17, 1
      %p119 = scmp.ne.s32.totalorder %s114, %s116
      %p120 = scmp.eq.s32.totalorder %s17, 0
      %p121 = por %p119, %p120
      %p122 = scmp.ne.s32.totalorder %s114, %s116
      %p123 = scmp.eq.s32.totalorder %s22, 1
      %p124 = por %p122, %p123
      %p125 = scmp.ne.s32.totalorder %s116, %s117
      %p126 = scmp.eq.s32.totalorder %s22, 0
      %p127 = por %p125, %p126
      %p128 = scmp.ne.s32.totalorder %s116, %s117
      %p129 = scmp.eq.s32.totalorder %s23, 1
      %p130 = por %p128, %p129
      %p132 = scmp.ne.s32.totalorder %s117, %s131
      %p133 = scmp.eq.s32.totalorder %s23, 0
      %p134 = por %p132, %p133
      %s135 = ssub.s32 %s17, %s24
      %p136 = scmp.eq.s32.totalorder %s135, 0
      %s138 = sadd.s32 %s137, 1
      %s139 = scalar_select %p136, %s137, %s138
      %p142 = pneg %p136
      %p143 = scmp.eq.s32.totalorder %s17, 1
      %p144 = por %p142, %p143
      %p145 = scmp.ne.s32.totalorder %s137, %s140
      %p146 = scmp.eq.s32.totalorder %s17, 0
      %p147 = por %p145, %p146
      %p148 = scmp.ne.s32.totalorder %s137, %s140
      %p149 = scmp.eq.s32.totalorder %s22, 1
      %p150 = por %p148, %p149
      %p151 = scmp.ne.s32.totalorder %s140, %s141
      %p152 = scmp.eq.s32.totalorder %s22, 0
      %p153 = por %p151, %p152
      %p154 = scmp.ne.s32.totalorder %s140, %s141
      %p155 = scmp.eq.s32.totalorder %s23, 1
      %p156 = por %p154, %p155
      %p158 = scmp.ne.s32.totalorder %s141, %s157
      %p159 = scmp.eq.s32.totalorder %s23, 0
      %p160 = por %p158, %p159
      %p161 = scmp.le.s32.totalorder 1, %s17
      %p162 = scmp.lt.s32.totalorder %s17, 3
      %p163 = pnand %p161, %p162
      %p164 = pneg %p163
      // Predicated region
      $region9: #{tpu_custom_call.1} parent=5 // pred_check
        _
      $region10: #{tpu_custom_call.1} parent=5 // pred_check_branch
        %166 = sbr.rel (%p163) target = $region12
      $region11: #{tpu_custom_call.1} parent=5 // pred_region
        %s167 = ssub.s32 %s17, 1
        // Predicated region
        $region13: #{tpu_custom_call.1} parent=11 // pred_check
          %p168 = pneg %p64
        $region14: #{tpu_custom_call.1} parent=11 // pred_check_branch
          %170 = sbr.rel (%p168) target = $region16
        $region15: #{tpu_custom_call.1} parent=11 // pred_region
          _
        $region16: #{tpu_custom_call.1} parent=11 // pred_fallthru
          _
        // Predicated region
        $region17: #{tpu_custom_call.1} parent=11 // pred_check
          %p171 = pneg %p85
        $region18: #{tpu_custom_call.1} parent=11 // pred_check_branch
          %173 = sbr.rel (%p171) target = $region20
        $region19: #{tpu_custom_call.1} parent=11 // pred_region
          _
        $region20: #{tpu_custom_call.1} parent=11 // pred_fallthru
          _
        // Predicated region
        $region21: #{tpu_custom_call.1} parent=11 // pred_check
          %p174 = pneg %p106
        $region22: #{tpu_custom_call.1} parent=11 // pred_check_branch
          %176 = sbr.rel (%p174) target = $region24
        $region23: #{tpu_custom_call.1} parent=11 // pred_region
          _
        $region24: #{tpu_custom_call.1} parent=11 // pred_fallthru
          _
        // Predicated region
        $region25: #{tpu_custom_call.1} parent=11 // pred_check
          %p177 = pneg %p127
        $region26: #{tpu_custom_call.1} parent=11 // pred_check_branch
          %179 = sbr.rel (%p177) target = $region28
        $region27: #{tpu_custom_call.1} parent=11 // pred_region
          _
        $region28: #{tpu_custom_call.1} parent=11 // pred_fallthru
          _
      $region12: #{tpu_custom_call.1} parent=5 // pred_fallthru
        _
      %p180 = scmp.lt.s32.totalorder %s17, 2
      // Predicated region
      $region29: #{tpu_custom_call.1} parent=5 // pred_check
        %p181 = pneg %p180
      $region30: #{tpu_custom_call.1} parent=5 // pred_check_branch
        %183 = sbr.rel (%p181) target = $region32
      $region31: #{tpu_custom_call.1} parent=5 // pred_region
        // Predicated region
        $region33: #{tpu_custom_call.1} parent=31 // pred_check
          %p184 = pneg %p37
        $region34: #{tpu_custom_call.1} parent=31 // pred_check_branch
          %186 = sbr.rel (%p184) target = $region36
        $region35: #{tpu_custom_call.1} parent=31 // pred_region
          %s187 = sand.u32 %s27, 1
          %s188 = scalar_lea.sflag [#allocation3], %s187
          %s189 = sand.u32 %s27, 1
          %s190 = smul.addr %s189, 64
          %s191 = scalar_lea.vmem [#allocation2], %s190
          %s193 = ssub.s32 1024, 1024
          %194 = vsyncadd %s188, %s193
          %s195 = smul.addr %s17, 8
          %s196 = smul.addr %s195, 128
          %s197 = scalar_lea.hbm %s0, %s196
          %s198 = sshll.u32 %s191, 4
          %s199 = int_to_ptr.vmem [resolvable:$true] %s198
          %204 = dma.hbm_to_vmem [thread:$0]  %s197, 1024, %s199, %s188, 256, 256, 16
        $region36: #{tpu_custom_call.1} parent=31 // pred_fallthru
          _
      $region32: #{tpu_custom_call.1} parent=5 // pred_fallthru
        _
      %p205 = scmp.le.s32.totalorder 1, %s17
      %p206 = scmp.lt.s32.totalorder %s17, 3
      %p207 = pnand %p205, %p206
      %p208 = pneg %p207
      // Predicated region
      $region37: #{tpu_custom_call.1} parent=5 // pred_check
        _
      $region38: #{tpu_custom_call.1} parent=5 // pred_check_branch
        %210 = sbr.rel (%p207) target = $region40
      $region39: #{tpu_custom_call.1} parent=5 // pred_region
        %s211 = ssub.s32 %s17, 1
        %s212 = sand.u32 %s30, 1
        %s213 = scalar_lea.sflag [#allocation3], %s212
        %s214 = sand.u32 %s30, 1
        %s215 = smul.addr %s214, 64
        %s216 = scalar_lea.vmem [#allocation2], %s215
        // Predicated region
        $region41: #{tpu_custom_call.1} parent=39 // pred_check
          %p217 = pneg %p43
        $region42: #{tpu_custom_call.1} parent=39 // pred_check_branch
          %219 = sbr.rel (%p217) target = $region44
        $region43: #{tpu_custom_call.1} parent=39 // pred_region
          %220 = dma.done %s213, 1024
        $region44: #{tpu_custom_call.1} parent=39 // pred_fallthru
          _
        %s221 = sand.u32 %s30, 1
        %s222 = scalar_lea.sflag [#allocation3], %s221
        %s223 = sand.u32 %s30, 1
        %s224 = smul.addr %s223, 64
        %s225 = scalar_lea.vmem [#allocation2], %s224
        %p226 = pneg %p43
        %p227 = pneg %p40
        %p228 = pneg %p64
        %p229 = pneg %p61
        %p230 = pneg %p85
        %p231 = pneg %p82
        %p232 = pneg %p106
        %p233 = pneg %p103
        %p234 = pneg %p127
        %p235 = pneg %p124
        %p236 = pneg %p153
        %p237 = pneg %p150
        %s238 = sand.u32 %s140, 1
        %s239 = scalar_lea.sflag [#allocation4], %s238
        %s240 = sand.u32 %s140, 1
        %s241 = smul.addr %s240, 64
        %s242 = scalar_lea.vmem [#allocation5], %s241
        %v244 = vld [vmem:[%s216] sm:$0xff]
        %v245 = vld [vmem:[%s216 + $0x8] sm:$0xff]
        %v246 = vld [vmem:[%s216 + $0x10] sm:$0xff]
        %v247 = vld [vmem:[%s216 + $0x18] sm:$0xff]
        %v248 = vld [vmem:[%s216 + $0x20] sm:$0xff]
        %v249 = vld [vmem:[%s216 + $0x28] sm:$0xff]
        %v250 = vld [vmem:[%s216 + $0x30] sm:$0xff]
        %v251 = vld [vmem:[%s216 + $0x38] sm:$0xff]
        %v252 = vpack.c.bf16 %v246, %v244
        %v253 = vpack.c.bf16 %v247, %v245
        %v254 = vpack.c.bf16 %v250, %v248
        %v255 = vpack.c.bf16 %v251, %v249
        %v256 = vld [vmem:[%s4] sm:$0xff]
        %v257 = vld [vmem:[%s4 + $0x8] sm:$0xff]
        %v258 = vld [vmem:[%s4 + $0x10] sm:$0xff]
        %v259 = vld [vmem:[%s4 + $0x18] sm:$0xff]
        %v260 = vld [vmem:[%s4 + $0x20] sm:$0xff]
        %v261 = vld [vmem:[%s4 + $0x28] sm:$0xff]
        %v262 = vld [vmem:[%s1] sm:$0xf]
        %264 = vset.pattern.permute.xlu0 0
        %265 = vperm.xlu0 %264, %v256
        %v266 = vpop.permute.xlu0 %265
        %vm268 = vcmask 261120
        %v270 = vsel %vm268, %v262, 0
        %272 = vmatprep.subr.bf16.mxu0 %v253
        %273 = vmatpush1.bf16.msra.mxu0 %v252
        %274 = vmatprep.subr.bf16.mxu0 %v255
        %275 = vmatpush1.bf16.msra.mxu0 %v254
        %276 = vmatprep.subr.bf16.mxu0 0
        %277 = vmatpush1.bf16.msra.mxu0 0
        %278 = vmatprep.subr.bf16.mxu0 0
        %279 = vmatpush1.bf16.msra.mxu0 0
        %280 = vmatprep.subr.bf16.mxu0 0
        %281 = vmatpush1.bf16.msra.mxu0 0
        %282 = vmatprep.subr.bf16.mxu0 0
        %283 = vmatpush1.bf16.msra.mxu0 0
        %284 = vmatprep.subr.bf16.mxu0 0
        %285 = vmatpush1.bf16.msra.mxu0 0
        %286 = vmatprep.subr.bf16.mxu0 0
        %287 = vmatpush1.bf16.msra.mxu0 0
        %288 = vmatprep.subr.bf16.mxu0 0
        %289 = vmatpush1.bf16.msra.mxu0 0
        %290 = vmatprep.subr.bf16.mxu0 0
        %291 = vmatpush1.bf16.msra.mxu0 0
        %292 = vmatprep.subr.bf16.mxu0 0
        %293 = vmatpush1.bf16.msra.mxu0 0
        %294 = vmatprep.subr.bf16.mxu0 0
        %295 = vmatpush1.bf16.msra.mxu0 0
        %296 = vmatprep.subr.bf16.mxu0 0
        %297 = vmatpush1.bf16.msra.mxu0 0
        %298 = vmatprep.subr.bf16.mxu0 0
        %299 = vmatpush1.bf16.msra.mxu0 0
        %300 = vmatprep.subr.bf16.mxu0 0
        %301 = vmatpush1.bf16.msra.mxu0 0
        %302 = vmatprep.subr.bf16.mxu0 0
        %303 = vmatpush1.bf16.msra.mxu0 0
        %304 = vmatprep.mubr.bf16.mxu0 0
        %305 = vmatmul.mubr.bf16.gmra.mrb[0].mxu0 %v270
        %v306 = vpop.f32.mrb[0].mxu0
        %v307 = vadd.f32 %v266, %v306
        %v308 = vpop.f32.mrb[0].mxu0
        %v309 = vadd.f32 %v266, %v308
        %v310 = vpop.f32.mrb[0].mxu0
        %v311 = vpop.f32.mrb[0].mxu0
        %312 = vdwg.mxu0
        %v313 = vmax.f32 %v307, 0.0
        %v314 = vmax.f32 %v309, 0.0
        %v315 = vlaneseq
        %v316 = vand.u32 %v315, 127
        %v317 = vadd.s32 %v316, 128
        %318 = vrot.lane.b32.xlu0 %v313, 16
        %v319 = vpop.permute.xlu0 %318
        %320 = vrot.lane.b32.xlu0 %v314, 16
        %v321 = vpop.permute.xlu0 %320
        %vm322 = vcmp.lt.s32.totalorder %v316, 16
        %v323 = vsel %vm322, %v319, %v321
        %v324 = vsel %vm322, %v321, %v319
        %vm325 = vcmp.ge.s32.totalorder %v316, 16
        %vm326 = vcmp.ge.s32.totalorder %v317, 16
        %v327 = vsel %vm325, %v324, 0.0
        %v328 = vsel %vm326, %v323, 0.0
        %329 = vrot.lane.b32.xlu0 %v313, 112
        %v330 = vpop.permute.xlu0 %329
        %331 = vrot.lane.b32.xlu0 %v314, 112
        %v332 = vpop.permute.xlu0 %331
        %vm333 = vcmp.lt.s32.totalorder %v316, 112
        %v334 = vsel %vm333, %v330, %v332
        %v335 = vsel %vm333, %v332, %v330
        %vm336 = vcmp.lt.s32.totalorder %v316, 240
        %vm337 = vcmp.lt.s32.totalorder %v317, 240
        %v338 = vsel %vm336, %v334, 0.0
        %v339 = vsel %vm337, %v335, 0.0
        %v340 = vpack.c.bf16 %v313, %v327
        %v341 = vpack.c.bf16 %v314, %v328
        %v342 = vpack.c.bf16 %v338, %v338
        %v343 = vpack.c.bf16 %v339, %v339
        %v344 = vld [vmem:[%s2] sm:$0xf]
        %346 = vset.pattern.permute.xlu0 0
        %347 = vperm.xlu0 %346, %v257
        %v348 = vpop.permute.xlu0 %347
        %vm350 = vcmask 195584
        %v352 = vsel %vm350, %v344, 0
        %vm354 = vcmask 1043456
        %v356 = vsel %vm354, %v342, 0
        %v359 = vsel %vm354, %v343, 0
        %361 = vmatprep.subr.bf16.mxu0 %v341
        %362 = vmatpush1.bf16.msra.mxu0 %v340
        %363 = vmatprep.subr.bf16.mxu0 %v359
        %364 = vmatpush1.bf16.msra.mxu0 %v356
        %365 = vmatprep.subr.bf16.mxu0 0
        %366 = vmatpush1.bf16.msra.mxu0 0
        %367 = vmatprep.subr.bf16.mxu0 0
        %368 = vmatpush1.bf16.msra.mxu0 0
        %369 = vmatprep.subr.bf16.mxu0 0
        %370 = vmatpush1.bf16.msra.mxu0 0
        %371 = vmatprep.subr.bf16.mxu0 0
        %372 = vmatpush1.bf16.msra.mxu0 0
        %373 = vmatprep.subr.bf16.mxu0 0
        %374 = vmatpush1.bf16.msra.mxu0 0
        %375 = vmatprep.subr.bf16.mxu0 0
        %376 = vmatpush1.bf16.msra.mxu0 0
        %377 = vmatprep.subr.bf16.mxu0 0
        %378 = vmatpush1.bf16.msra.mxu0 0
        %379 = vmatprep.subr.bf16.mxu0 0
        %380 = vmatpush1.bf16.msra.mxu0 0
        %381 = vmatprep.subr.bf16.mxu0 0
        %382 = vmatpush1.bf16.msra.mxu0 0
        %383 = vmatprep.subr.bf16.mxu0 0
        %384 = vmatpush1.bf16.msra.mxu0 0
        %385 = vmatprep.subr.bf16.mxu0 0
        %386 = vmatpush1.bf16.msra.mxu0 0
        %387 = vmatprep.subr.bf16.mxu0 0
        %388 = vmatpush1.bf16.msra.mxu0 0
        %389 = vmatprep.subr.bf16.mxu0 0
        %390 = vmatpush1.bf16.msra.mxu0 0
        %391 = vmatprep.subr.bf16.mxu0 0
        %392 = vmatpush1.bf16.msra.mxu0 0
        %393 = vmatprep.mubr.bf16.mxu0 0
        %394 = vmatmul.mubr.bf16.gmra.mrb[0].mxu0 %v352
        %v395 = vpop.f32.mrb[0].mxu0
        %v396 = vadd.f32 %v348, %v395
        %v397 = vpop.f32.mrb[0].mxu0
        %v398 = vadd.f32 %v348, %v397
        %v399 = vpop.f32.mrb[0].mxu0
        %v400 = vpop.f32.mrb[0].mxu0
        %401 = vdwg.mxu0
        %v402 = vmax.f32 %v396, 0.0
        %v403 = vmax.f32 %v398, 0.0
        %v404 = vld [vmem:[%s3] sm:$0xf]
        %v405 = vld [vmem:[%s3 + $0x4] sm:$0xf]
        %v406 = vld [vmem:[%s3 + $0x8] sm:$0xf]
        %v407 = vld [vmem:[%s3 + $0xc] sm:$0xf]
        %v408 = vpack.c.bf16 %v402, %v402
        %v409 = vpack.c.bf16 %v403, %v403
        %411 = vset.pattern.permute.xlu0 0
        %412 = vperm.xlu0 %411, %v258
        %v413 = vpop.permute.xlu0 %412
        %416 = vset.pattern.permute.xlu0 0
        %417 = vperm.xlu0 %416, %v259
        %v418 = vpop.permute.xlu0 %417
        %421 = vset.pattern.permute.xlu0 0
        %422 = vperm.xlu0 %421, %v260
        %v423 = vpop.permute.xlu0 %422
        %426 = vset.pattern.permute.xlu0 0
        %427 = vperm.xlu0 %426, %v261
        %v428 = vpop.permute.xlu0 %427
        %v434 = vunpack.c.l.b16 %v404
        %v435 = vunpack.c.l.b16 %v405
        %v436 = vunpack.c.l.b16 %v406
        %v437 = vunpack.c.l.b16 %v407
        %v438 = vpack.c.b16 %v435, %v434
        %v439 = vpack.c.b16 %v437, %v436
        %vm440 = vcmask 64512
        %v442 = vsel %vm440, %v438, 0
        %v445 = vsel %vm440, %v439, 0
        %v448 = vsel %vm354, %v408, 0
        %v451 = vsel %vm354, %v409, 0
        %453 = vmatprep.subr.bf16.mxu0 %v451
        %454 = vmatpush1.bf16.msra.mxu0 %v448
        %455 = vmatprep.subr.bf16.mxu0 0
        %456 = vmatpush1.bf16.msra.mxu0 0
        %457 = vmatprep.subr.bf16.mxu0 0
        %458 = vmatpush1.bf16.msra.mxu0 0
        %459 = vmatprep.subr.bf16.mxu0 0
        %460 = vmatpush1.bf16.msra.mxu0 0
        %461 = vmatprep.subr.bf16.mxu0 0
        %462 = vmatpush1.bf16.msra.mxu0 0
        %463 = vmatprep.subr.bf16.mxu0 0
        %464 = vmatpush1.bf16.msra.mxu0 0
        %465 = vmatprep.subr.bf16.mxu0 0
        %466 = vmatpush1.bf16.msra.mxu0 0
        %467 = vmatprep.subr.bf16.mxu0 0
        %468 = vmatpush1.bf16.msra.mxu0 0
        %469 = vmatprep.subr.bf16.mxu0 0
        %470 = vmatpush1.bf16.msra.mxu0 0
        %471 = vmatprep.subr.bf16.mxu0 0
        %472 = vmatpush1.bf16.msra.mxu0 0
        %473 = vmatprep.subr.bf16.mxu0 0
        %474 = vmatpush1.bf16.msra.mxu0 0
        %475 = vmatprep.subr.bf16.mxu0 0
        %476 = vmatpush1.bf16.msra.mxu0 0
        %477 = vmatprep.subr.bf16.mxu0 0
        %478 = vmatpush1.bf16.msra.mxu0 0
        %479 = vmatprep.subr.bf16.mxu0 0
        %480 = vmatpush1.bf16.msra.mxu0 0
        %481 = vmatprep.subr.bf16.mxu0 0
        %482 = vmatpush1.bf16.msra.mxu0 0
        %483 = vmatprep.subr.bf16.mxu0 0
        %484 = vmatpush1.bf16.msra.mxu0 0
        %485 = vmatprep.mubr.bf16.mxu0 0
        %486 = vmatmul.mubr.bf16.gmra.mrb[0].mxu0 %v442
        %v487 = vpop.f32.mrb[0].mxu0
        %v488 = vadd.f32 %v413, %v487
        %v489 = vpop.f32.mrb[0].mxu0
        %v490 = vadd.f32 %v413, %v489
        %v491 = vpop.f32.mrb[0].mxu0
        %v492 = vadd.f32 %v418, %v491
        %v493 = vpop.f32.mrb[0].mxu0
        %v494 = vadd.f32 %v418, %v493
        %495 = vmatprep.mubr.bf16.mxu0 0
        %496 = vmatmul.mubr.bf16.gmra.mrb[0].mxu0 %v445
        %v497 = vpop.f32.mrb[0].mxu0
        %v498 = vadd.f32 %v423, %v497
        %v499 = vpop.f32.mrb[0].mxu0
        %v500 = vadd.f32 %v423, %v499
        %v501 = vpop.f32.mrb[0].mxu0
        %v502 = vadd.f32 %v428, %v501
        %v503 = vpop.f32.mrb[0].mxu0
        %v504 = vadd.f32 %v428, %v503
        %505 = vdwg.mxu0
        %v506 = vadd.f32 %v488, %v244
        %v507 = vadd.f32 %v490, %v245
        %v508 = vadd.f32 %v492, %v246
        %v509 = vadd.f32 %v494, %v247
        %v510 = vadd.f32 %v498, %v248
        %v511 = vadd.f32 %v500, %v249
        %v512 = vadd.f32 %v502, %v250
        %v513 = vadd.f32 %v504, %v251
        %v514 = vmax.f32 %v506, 0.0
        %v515 = vmax.f32 %v507, 0.0
        %v516 = vmax.f32 %v508, 0.0
        %v517 = vmax.f32 %v509, 0.0
        %v518 = vmax.f32 %v510, 0.0
        %v519 = vmax.f32 %v511, 0.0
        %v520 = vmax.f32 %v512, 0.0
        %v521 = vmax.f32 %v513, 0.0
        %522 = vst [vmem:[%s242] sm:$0xff] %v514
        %523 = vst [vmem:[%s242 + $0x8] sm:$0xff] %v515
        %524 = vst [vmem:[%s242 + $0x10] sm:$0xff] %v516
        %525 = vst [vmem:[%s242 + $0x18] sm:$0xff] %v517
        %526 = vst [vmem:[%s242 + $0x20] sm:$0xff] %v518
        %527 = vst [vmem:[%s242 + $0x28] sm:$0xff] %v519
        %528 = vst [vmem:[%s242 + $0x30] sm:$0xff] %v520
        %529 = vst [vmem:[%s242 + $0x38] sm:$0xff] %v521
        %s530 = sand.u32 %s140, 1
        %s531 = scalar_lea.sflag [#allocation4], %s530
        %s532 = sand.u32 %s140, 1
        %s533 = smul.addr %s532, 64
        %s534 = scalar_lea.vmem [#allocation5], %s533
        // Predicated region
        $region45: #{tpu_custom_call.1} parent=39 // pred_check
          %p535 = pneg %p150
        $region46: #{tpu_custom_call.1} parent=39 // pred_check_branch
          %537 = sbr.rel (%p535) target = $region48
        $region47: #{tpu_custom_call.1} parent=39 // pred_region
          %s539 = ssub.s32 1024, 1024
          %540 = vsyncadd %s531, %s539
          %s541 = smul.addr %s22, 8
          %s542 = smul.addr %s541, 128
          %s543 = scalar_lea.hbm %s5, %s542
          %s544 = sshll.u32 %s534, 4
          %s545 = int_to_ptr.vmem [resolvable:$true] %s544
          %550 = dma.vmem_to_hbm [thread:$0]  %s545, 1024, %s543, %s531, 256, 256, 16
        $region48: #{tpu_custom_call.1} parent=39 // pred_fallthru
          _
      $region40: #{tpu_custom_call.1} parent=5 // pred_fallthru
        _
      %p551 = scmp.le.s32.totalorder 2, %s17
      // Predicated region
      $region49: #{tpu_custom_call.1} parent=5 // pred_check
        %p552 = pneg %p551
      $region50: #{tpu_custom_call.1} parent=5 // pred_check_branch
        %554 = sbr.rel (%p552) target = $region52
      $region51: #{tpu_custom_call.1} parent=5 // pred_region
        %s555 = ssub.s32 %s17, 2
        // Predicated region
        $region53: #{tpu_custom_call.1} parent=51 // pred_check
          %p556 = pneg %p156
        $region54: #{tpu_custom_call.1} parent=51 // pred_check_branch
          %558 = sbr.rel (%p556) target = $region56
        $region55: #{tpu_custom_call.1} parent=51 // pred_region
          %s559 = sand.u32 %s141, 1
          %s560 = scalar_lea.sflag [#allocation4], %s559
          %s561 = sand.u32 %s141, 1
          %s562 = smul.addr %s561, 64
          %s563 = scalar_lea.vmem [#allocation5], %s562
          %564 = dma.done %s560, 1024
        $region56: #{tpu_custom_call.1} parent=51 // pred_fallthru
          _
      $region52: #{tpu_custom_call.1} parent=5 // pred_fallthru
        _
    $region6: #{tpu_custom_call.1} parent=1 // loop_footer
      %s21 = sadd.s32 1, %s17
    $region7: #{tpu_custom_call.1} parent=1 // loop_footer_branch
      %16 = sbr.rel target = $region3
    $region8: #{tpu_custom_call.1} parent=1 // loop_exit
      _
    %565 = vsyncpa [#allocation3], 1
    %s566 = scalar_lea.sflag [#allocation3], 1
    %567 = vsyncpa %s566, 1
    %568 = vsyncpa [#allocation4], 1
    %s569 = scalar_lea.sflag [#allocation4], 1
    %570 = vsyncpa %s569, 1

</llo_original>
